<compile_context>
chip_gen: v5e
topology: v5e:2x2
jax: 0.10.0
libtpu: 0.0.40
codegen_flags: <defaults>
</compile_context>

<pallas_src>
import numpy as np
import jax
import jax.numpy as jnp
from jax.experimental import pallas as pl
from jax.experimental.pallas import tpu as pltpu


# ----------------------------------------------------------------------------
# Kernel: one batch tile does conv(+ReLU), fc1(+ReLU), folded fc2*fc3.
# ----------------------------------------------------------------------------
def smallnet_kernel(x_ref, wcf_ref, bcf_ref, w1_ref, b1_ref,
                    w23_ref, b23_ref, out_ref):
    x = x_ref[...]                                            # [TB, 18]

    # conv1 + flatten folded into one matmul (cols already in torch NCHW
    # flatten order cout*4 + p), bias + ReLU.
    h0 = jnp.dot(x, wcf_ref[...], preferred_element_type=jnp.float32)
    h0 = jnp.maximum(h0 + bcf_ref[...], 0.0)                  # [TB, 64]

    # fc1 + ReLU (lane-padded to 128; padded lanes stay exactly 0).
    h1 = jnp.dot(h0, w1_ref[...], preferred_element_type=jnp.float32)
    h1 = jnp.maximum(h1 + b1_ref[...], 0.0)                   # [TB, 128]

    # fc2 . fc3 folded into a single [128, 1] weight (zero rows for padding).
    out_ref[...] = (jnp.dot(h1, w23_ref[...],
                            preferred_element_type=jnp.float32)
                    + b23_ref[...])                           # [TB, 1]


def _round_up(n, m):
    return pl.cdiv(n, m) * m


# ----------------------------------------------------------------------------
# Wrapper: flatten x, pad batch, batch-tiled grid with resident weights.
# ----------------------------------------------------------------------------
def smallnet_forward(x, kernel_params, *, block_b=None):
    """x: [B, 2, 3, 3] float32 (NCHW). Returns [B, 1] float32."""
    wcf, bcf, w1p, b1p, w23, b23 = kernel_params
    B = x.shape[0]

    # Flatten NCHW row-major: feature f = c*9 + h*3 + w  (18 features).
    xf = x.reshape(B, 18)

    # Batch tile: big enough to amortize grid overhead, multiple of 8 sublanes.
    if block_b is None:
        block_b = 1024
    TB = int(_round_up(min(block_b, _round_up(B, 8)), 8))
    Bp = int(_round_up(B, TB))
    if Bp != B:
        xf = jnp.pad(xf, ((0, Bp - B), (0, 0)))

    grid = (Bp // TB,)

    out = pl.pallas_call(
        smallnet_kernel,
        out_shape=jax.ShapeDtypeStruct((Bp, 1), jnp.float32),
        grid_spec=pltpu.PrefetchScalarGridSpec(
            num_scalar_prefetch=0,
            grid=grid,
            in_specs=[
                pl.BlockSpec((TB, 18), lambda i: (i, 0)),      # x tile
                pl.BlockSpec((18, 64), lambda i: (0, 0)),      # folded conv W
                pl.BlockSpec((1, 64), lambda i: (0, 0)),       # folded conv b
                pl.BlockSpec((64, 128), lambda i: (0, 0)),     # fc1 W (padded)
                pl.BlockSpec((1, 128), lambda i: (0, 0)),      # fc1 b (padded)
                pl.BlockSpec((128, 1), lambda i: (0, 0)),      # fc2*fc3 W
                pl.BlockSpec((1, 1), lambda i: (0, 0)),        # fc2*fc3 b
            ],
            out_specs=pl.BlockSpec((TB, 1), lambda i: (i, 0)),
        ),
        compiler_params=pltpu.CompilerParams(
            dimension_semantics=("parallel",)),
    )(xf, wcf, bcf, w1p, b1p, w23, b23)

    return out[:B]


# ----------------------------------------------------------------------------
# Parameter setup (glue, runs once): torch-style init + folding/padding.
# ----------------------------------------------------------------------------
def init_params(key):
    """Deterministic PyTorch-style uniform(-1/sqrt(fan_in), 1/sqrt(fan_in))."""
    ks = jax.random.split(key, 8)

    def u(k, shape, fan_in):
        b = 1.0 / np.sqrt(fan_in)
        return jax.random.uniform(k, shape, jnp.float32, -b, b)

    # torch-layout parameters
    wc_t = u(ks[0], (16, 2, 2, 2), 8)     # conv1.weight [Cout, Cin, Kh, Kw]
    bc_t = u(ks[1], (16,), 8)             # conv1.bias
    w1_t = u(ks[2], (120, 64), 64)        # fc1.weight [out, in]
    b1_t = u(ks[3], (120,), 64)
    w2_t = u(ks[4], (84, 120), 120)
    b2_t = u(ks[5], (84,), 120)
    w3_t = u(ks[6], (1, 84), 84)
    b3_t = u(ks[7], (1,), 84)

    # ---- folded conv weight: [18, 64], x feature f = cin*9 + h*3 + w,
    # ---- output col j = cout*4 + ph*2 + pw (torch NCHW flatten order).
    wc_np = np.asarray(wc_t)
    wcf = np.zeros((18, 64), np.float32)
    for cout in range(16):
        for ph in range(2):
            for pw in range(2):
                j = cout * 4 + ph * 2 + pw
                for cin in range(2):
                    for kh in range(2):
                        for kw in range(2):
                            f = cin * 9 + (ph + kh) * 3 + (pw + kw)
                            wcf[f, j] += wc_np[cout, cin, kh, kw]
    bcf = np.repeat(np.asarray(bc_t), 4).reshape(1, 64).astype(np.float32)

    # ---- fc1, lane-padded 120 -> 128 with zeros (padded lanes give ReLU(0)=0)
    w1p = np.zeros((64, 128), np.float32)
    w1p[:, :120] = np.asarray(w1_t).T
    b1p = np.zeros((1, 128), np.float32)
    b1p[0, :120] = np.asarray(b1_t)

    # ---- fc2 . fc3 folded: out = h1 @ (W2^T W3^T) + (b2 W3^T + b3)
    w23_core = np.asarray(w2_t).T @ np.asarray(w3_t).T        # [120, 1]
    w23 = np.zeros((128, 1), np.float32)
    w23[:120, :] = w23_core
    b23 = (np.asarray(b2_t) @ np.asarray(w3_t).T
           + np.asarray(b3_t)).reshape(1, 1).astype(np.float32)

    kernel_params = (jnp.asarray(wcf), jnp.asarray(bcf),
                     jnp.asarray(w1p), jnp.asarray(b1p),
                     jnp.asarray(w23), jnp.asarray(b23))
    torch_params = (wc_t, bc_t, w1_t, b1_t, w2_t, b2_t, w3_t, b3_t)
    return kernel_params, torch_params


# ----------------------------------------------------------------------------
# Pure-JAX reference matching the PyTorch forward exactly.
# ----------------------------------------------------------------------------
def reference_forward(x, torch_params):
    wc_t, bc_t, w1_t, b1_t, w2_t, b2_t, w3_t, b3_t = torch_params
    y = jax.lax.conv_general_dilated(
        x, wc_t, window_strides=(1, 1), padding="VALID",
        dimension_numbers=("NCHW", "OIHW", "NCHW"))
    y = jax.nn.relu(y + bc_t.reshape(1, 16, 1, 1))
    y = y.reshape(y.shape[0], -1)                     # torch.flatten(x, 1)
    y = jax.nn.relu(y @ w1_t.T + b1_t)
    y = y @ w2_t.T + b2_t
    y = y @ w3_t.T + b3_t
    return y


if __name__ == "__main__":
    key = jax.random.PRNGKey(0)
    k_param, k_x1, k_x2 = jax.random.split(key, 3)

    kernel_params, torch_params = init_params(k_param)

    # Small-batch check (single grid step).
    B = 8
    x = jax.random.normal(k_x1, (B, 2, 3, 3), jnp.float32)   # NCHW, as PyTorch
    out = jax.block_until_ready(smallnet_forward(x, kernel_params))
    ref = jax.block_until_ready(reference_forward(x, torch_params))
    np.testing.assert_allclose(np.asarray(out), np.asarray(ref),
                               rtol=1e-4, atol=1e-4)
    assert out.shape == (B, 1)

    # Multi-tile check (exercises the batch grid + padding path).
    B2 = 300
    x2 = jax.random.normal(k_x2, (B2, 2, 3, 3), jnp.float32)
    out2 = jax.block_until_ready(
        smallnet_forward(x2, kernel_params, block_b=128))
    ref2 = jax.block_until_ready(reference_forward(x2, torch_params))
    np.testing.assert_allclose(np.asarray(out2), np.asarray(ref2),
                               rtol=1e-4, atol=1e-4)
    assert out2.shape == (B2, 1)

    print("KERNEL_OK")
</pallas_src>

<mosaic_0001>
module attributes {stable_mosaic.version = 11 : i64} {
  func.func @smallnet_kernel(%arg0: i32, %arg1: memref<8x18xf32, #tpu.memory_space<vmem>>, %arg2: memref<18x64xf32, #tpu.memory_space<vmem>>, %arg3: memref<1x64xf32, #tpu.memory_space<vmem>>, %arg4: memref<64x128xf32, #tpu.memory_space<vmem>>, %arg5: memref<1x128xf32, #tpu.memory_space<vmem>>, %arg6: memref<128x1xf32, #tpu.memory_space<vmem>>, %arg7: memref<1x1xf32, #tpu.memory_space<vmem>>, %arg8: memref<8x1xf32, #tpu.memory_space<vmem>>) attributes {dimension_semantics = [#tpu.dimension_semantics<parallel>], iteration_bounds = array<i64: 1>, scalar_prefetch = 0 : i64, scratch_operands = 0 : i64, tpu.core_type = #tpu.core_type<tc>, window_params = [{transform_indices = @transform_0, window_bounds = array<i64: 8, 18>}, {pipeline_mode = #tpu.pipeline_mode<synchronous>, transform_indices = @transform_1, window_bounds = array<i64: 18, 64>}, {pipeline_mode = #tpu.pipeline_mode<synchronous>, transform_indices = @transform_2, window_bounds = array<i64: 1, 64>}, {pipeline_mode = #tpu.pipeline_mode<synchronous>, transform_indices = @transform_3, window_bounds = array<i64: 64, 128>}, {pipeline_mode = #tpu.pipeline_mode<synchronous>, transform_indices = @transform_4, window_bounds = array<i64: 1, 128>}, {pipeline_mode = #tpu.pipeline_mode<synchronous>, transform_indices = @transform_5, window_bounds = array<i64: 128, 1>}, {pipeline_mode = #tpu.pipeline_mode<synchronous>, transform_indices = @transform_6, window_bounds = array<i64: 1, 1>}, {transform_indices = @transform_7, window_bounds = array<i64: 8, 1>}]} {
    %c0 = arith.constant 0 : index
    %c0_0 = arith.constant 0 : index
    %0 = vector.load %arg1[%c0, %c0_0] : memref<8x18xf32, #tpu.memory_space<vmem>>, vector<8x18xf32>
    %c0_1 = arith.constant 0 : index
    %c0_2 = arith.constant 0 : index
    %1 = vector.load %arg2[%c0_1, %c0_2] : memref<18x64xf32, #tpu.memory_space<vmem>>, vector<18x64xf32>
    %cst = arith.constant dense<0.000000e+00> : vector<8x64xf32>
    %2 = tpu.matmul %0, %1, %cst {dimension_numbers = #tpu.dot_dimension_numbers<[1], [0], [0], [1], [0, 0, 1, 1], [], []>} : vector<8x18xf32>, vector<18x64xf32>, vector<8x64xf32> -> vector<8x64xf32>
    %c0_3 = arith.constant 0 : index
    %c0_4 = arith.constant 0 : index
    %3 = vector.load %arg3[%c0_3, %c0_4] : memref<1x64xf32, #tpu.memory_space<vmem>>, vector<1x64xf32>
    %4 = vector.broadcast %3 : vector<1x64xf32> to vector<8x64xf32>
    %5 = arith.addf %2, %4 : vector<8x64xf32>
    %cst_5 = arith.constant 0.000000e+00 : f32
    %6 = vector.broadcast %cst_5 : f32 to vector<8x64xf32>
    %7 = arith.maximumf %5, %6 : vector<8x64xf32>
    %c0_6 = arith.constant 0 : index
    %c0_7 = arith.constant 0 : index
    %8 = vector.load %arg4[%c0_6, %c0_7] : memref<64x128xf32, #tpu.memory_space<vmem>>, vector<64x128xf32>
    %cst_8 = arith.constant dense<0.000000e+00> : vector<8x128xf32>
    %9 = tpu.matmul %7, %8, %cst_8 {dimension_numbers = #tpu.dot_dimension_numbers<[1], [0], [0], [1], [0, 0, 1, 1], [], []>} : vector<8x64xf32>, vector<64x128xf32>, vector<8x128xf32> -> vector<8x128xf32>
    %c0_9 = arith.constant 0 : index
    %c0_10 = arith.constant 0 : index
    %10 = vector.load %arg5[%c0_9, %c0_10] : memref<1x128xf32, #tpu.memory_space<vmem>>, vector<1x128xf32>
    %11 = vector.broadcast %10 : vector<1x128xf32> to vector<8x128xf32>
    %12 = arith.addf %9, %11 : vector<8x128xf32>
    %cst_11 = arith.constant 0.000000e+00 : f32
    %13 = vector.broadcast %cst_11 : f32 to vector<8x128xf32>
    %14 = arith.maximumf %12, %13 : vector<8x128xf32>
    %c0_12 = arith.constant 0 : index
    %c0_13 = arith.constant 0 : index
    %15 = vector.load %arg6[%c0_12, %c0_13] : memref<128x1xf32, #tpu.memory_space<vmem>>, vector<128x1xf32>
    %cst_14 = arith.constant dense<0.000000e+00> : vector<8x1xf32>
    %16 = tpu.matmul %14, %15, %cst_14 {dimension_numbers = #tpu.dot_dimension_numbers<[1], [0], [0], [1], [0, 0, 1, 1], [], []>} : vector<8x128xf32>, vector<128x1xf32>, vector<8x1xf32> -> vector<8x1xf32>
    %c0_15 = arith.constant 0 : index
    %c0_16 = arith.constant 0 : index
    %17 = vector.load %arg7[%c0_15, %c0_16] : memref<1x1xf32, #tpu.memory_space<vmem>>, vector<1x1xf32>
    %18 = vector.broadcast %17 : vector<1x1xf32> to vector<8x1xf32>
    %19 = arith.addf %16, %18 : vector<8x1xf32>
    %c0_17 = arith.constant 0 : index
    %c0_18 = arith.constant 0 : index
    %20 = vector.load %arg8[%c0_17, %c0_18] : memref<8x1xf32, #tpu.memory_space<vmem>>, vector<8x1xf32>
    tpu.vector_store %arg8[%c0_17, %c0_18], %19 {strides = array<i32>} : memref<8x1xf32, #tpu.memory_space<vmem>>, vector<8x1xf32>,
    return
  }
  func.func @transform_0(%arg0: i32) -> (i32, i32) {
    %c0_i32 = arith.constant 0 : i32
    %c0_i32_0 = arith.constant 0 : i32
    return %arg0, %c0_i32 : i32, i32
  }
  func.func @transform_1(%arg0: i32) -> (i32, i32) {
    %c0_i32 = arith.constant 0 : i32
    %c0_i32_0 = arith.constant 0 : i32
    %c0_i32_1 = arith.constant 0 : i32
    return %c0_i32, %c0_i32_0 : i32, i32
  }
  func.func @transform_2(%arg0: i32) -> (i32, i32) {
    %c0_i32 = arith.constant 0 : i32
    %c0_i32_0 = arith.constant 0 : i32
    %c0_i32_1 = arith.constant 0 : i32
    return %c0_i32, %c0_i32_0 : i32, i32
  }
  func.func @transform_3(%arg0: i32) -> (i32, i32) {
    %c0_i32 = arith.constant 0 : i32
    %c0_i32_0 = arith.constant 0 : i32
    %c0_i32_1 = arith.constant 0 : i32
    return %c0_i32, %c0_i32_0 : i32, i32
  }
  func.func @transform_4(%arg0: i32) -> (i32, i32) {
    %c0_i32 = arith.constant 0 : i32
    %c0_i32_0 = arith.constant 0 : i32
    %c0_i32_1 = arith.constant 0 : i32
    return %c0_i32, %c0_i32_0 : i32, i32
  }
  func.func @transform_5(%arg0: i32) -> (i32, i32) {
    %c0_i32 = arith.constant 0 : i32
    %c0_i32_0 = arith.constant 0 : i32
    %c0_i32_1 = arith.constant 0 : i32
    return %c0_i32, %c0_i32_0 : i32, i32
  }
  func.func @transform_6(%arg0: i32) -> (i32, i32) {
    %c0_i32 = arith.constant 0 : i32
    %c0_i32_0 = arith.constant 0 : i32
    %c0_i32_1 = arith.constant 0 : i32
    return %c0_i32, %c0_i32_0 : i32, i32
  }
  func.func @transform_7(%arg0: i32) -> (i32, i32) {
    %c0_i32 = arith.constant 0 : i32
    %c0_i32_0 = arith.constant 0 : i32
    return %arg0, %c0_i32 : i32, i32
  }
}

</mosaic_0001>

<llo_original>
// kernel: tpu_custom_call.1
$region0: #{tpu_custom_call.1}
  #allocation0 [shape = 'u32[]', space=smem, size = 0x4, offset = 0x4, fixed_abs, tag = 'smem constant byte address 0x4 - core index']
  #allocation1 [shape = 'u32[72,128]{1,0:T(1,128)}', space=vmem, size = 0x9000, scoped, tag = 'internal scratch']
  #allocation2 [shape = 'f32[1,1]{1,0:T(1,128)S(1)}', space=vmem, size = 0x200, scoped, tag = 'scoped memory for tpu_custom_call.1']
  %s0 = inlined_call_operand.vmem [shape: f32[8,18], index: 0, kind: input, shape index: {}]
  %s1 = inlined_call_operand.vmem [shape: f32[18,64], index: 1, kind: input, shape index: {}]
  %s2 = inlined_call_operand.vmem [shape: f32[1,64], index: 2, kind: input, shape index: {}]
  %s3 = inlined_call_operand.vmem [shape: f32[64,128], index: 3, kind: input, shape index: {}]
  %s4 = inlined_call_operand.vmem [shape: f32[1,128], index: 4, kind: input, shape index: {}]
  %s5 = inlined_call_operand.vmem [shape: f32[128,1], index: 5, kind: input, shape index: {}]
  %s6 = inlined_call_operand.<no memory space> [shape: f32[1,1], index: 6, kind: input, shape index: {}]
  %s7 = inlined_call_operand.vmem [shape: f32[8,1], index: 7, kind: output, shape index: {}]
  %s8 = sld [smem:[#allocation0]]
  $region38: #{tpu_custom_call.1} parent=0
    _
  %s10 = ssub.s32 1, %s8
  %s11 = scalar_select 0, %s10, %s8
  %v12 = vstv %s6
  %13 = vst [vmem:[#allocation2] sm:$0x1] %v12
  // Predicated region
  $region2: #{tpu_custom_call.1} parent=0 // pred_check
    _
  $region3: #{tpu_custom_call.1} parent=0 // pred_check_branch
    %15 = sbr.rel (0) target = $region5
  $region4: #{tpu_custom_call.1} parent=0 // pred_region
    _
  $region5: #{tpu_custom_call.1} parent=0 // pred_fallthru
    _
  // Predicated region
  $region6: #{tpu_custom_call.1} parent=0 // pred_check
    _
  $region7: #{tpu_custom_call.1} parent=0 // pred_check_branch
    %17 = sbr.rel (0) target = $region9
  $region8: #{tpu_custom_call.1} parent=0 // pred_region
    _
  $region9: #{tpu_custom_call.1} parent=0 // pred_fallthru
    _
  // Predicated region
  $region10: #{tpu_custom_call.1} parent=0 // pred_check
    _
  $region11: #{tpu_custom_call.1} parent=0 // pred_check_branch
    %19 = sbr.rel (0) target = $region13
  $region12: #{tpu_custom_call.1} parent=0 // pred_region
    _
  $region13: #{tpu_custom_call.1} parent=0 // pred_fallthru
    _
  // Predicated region
  $region14: #{tpu_custom_call.1} parent=0 // pred_check
    _
  $region15: #{tpu_custom_call.1} parent=0 // pred_check_branch
    %21 = sbr.rel (0) target = $region17
  $region16: #{tpu_custom_call.1} parent=0 // pred_region
    _
  $region17: #{tpu_custom_call.1} parent=0 // pred_fallthru
    _
  // Predicated region
  $region18: #{tpu_custom_call.1} parent=0 // pred_check
    _
  $region19: #{tpu_custom_call.1} parent=0 // pred_check_branch
    %23 = sbr.rel (0) target = $region21
  $region20: #{tpu_custom_call.1} parent=0 // pred_region
    _
  $region21: #{tpu_custom_call.1} parent=0 // pred_fallthru
    _
  // Predicated region
  $region22: #{tpu_custom_call.1} parent=0 // pred_check
    _
  $region23: #{tpu_custom_call.1} parent=0 // pred_check_branch
    %25 = sbr.rel (0) target = $region25
  $region24: #{tpu_custom_call.1} parent=0 // pred_region
    _
  $region25: #{tpu_custom_call.1} parent=0 // pred_fallthru
    _
  // Predicated region
  $region26: #{tpu_custom_call.1} parent=0 // pred_check
    _
  $region27: #{tpu_custom_call.1} parent=0 // pred_check_branch
    %27 = sbr.rel (0) target = $region29
  $region28: #{tpu_custom_call.1} parent=0 // pred_region
    _
  $region29: #{tpu_custom_call.1} parent=0 // pred_fallthru
    _
  %v28 = vld [vmem:[%s0] sm:$0xff]
  %v29 = vld [vmem:[%s1] sm:$0xff]
  %v30 = vld [vmem:[%s1 + $0x8] sm:$0xff]
  %v31 = vld [vmem:[%s1 + $0x10] sm:$0x3]
  %v32 = vld [vmem:[%s2] sm:$0x1]
  %v34 = vperm.slane %v32, 0
  %vm36 = vcmask 146432
  %v38 = vsel %vm36, %v28, 0
  %vm40 = vcmask 1041408
  %v42 = vsel %vm40, %v31, 0
  %44 = vmatpush.msra.mxu0 0.0
  %45 = vmatpush.msra.mxu0 0.0
  %46 = vmatpush.msra.mxu0 0.0
  %47 = vmatpush.msra.mxu0 0.0
  %48 = vmatpush.msra.mxu0 0.0
  %49 = vmatpush.msra.mxu0 0.0
  %50 = vmatpush.msra.mxu0 0.0
  %51 = vmatpush.msra.mxu0 0.0
  %52 = vmatpush.msra.mxu0 0.0
  %53 = vmatpush.msra.mxu0 0.0
  %54 = vmatpush.msra.mxu0 0.0
  %55 = vmatpush.msra.mxu0 0.0
  %56 = vmatpush.msra.mxu0 0.0
  %57 = vmatpush.msra.mxu0 %v42
  %58 = vmatpush.msra.mxu0 %v30
  %59 = vmatpush.msra.mxu0 %v29
  %60 = vmatmul.f32.gmra.mxu0 %v38
  %v61 = vpop.f32.mrf.mxu0
  %v62 = vadd.f32 %v34, %v61
  %63 = vdwg.mxu0
  %v64 = vmax.f32 %v62, 0.0
  %v65 = vld [vmem:[%s3] sm:$0xff]
  %v66 = vld [vmem:[%s3 + $0x8] sm:$0xff]
  %v67 = vld [vmem:[%s3 + $0x10] sm:$0xff]
  %v68 = vld [vmem:[%s3 + $0x18] sm:$0xff]
  %v69 = vld [vmem:[%s3 + $0x20] sm:$0xff]
  %v70 = vld [vmem:[%s3 + $0x28] sm:$0xff]
  %v71 = vld [vmem:[%s3 + $0x30] sm:$0xff]
  %v72 = vld [vmem:[%s3 + $0x38] sm:$0xff]
  %v73 = vld [vmem:[%s4] sm:$0x1]
  %v75 = vperm.slane %v73, 0
  %vm77 = vcmask 523264
  %v79 = vsel %vm77, %v64, 0
  %81 = vmatpush.msra.mxu0 0.0
  %82 = vmatpush.msra.mxu0 0.0
  %83 = vmatpush.msra.mxu0 0.0
  %84 = vmatpush.msra.mxu0 0.0
  %85 = vmatpush.msra.mxu0 0.0
  %86 = vmatpush.msra.mxu0 0.0
  %87 = vmatpush.msra.mxu0 0.0
  %88 = vmatpush.msra.mxu0 0.0
  %89 = vmatpush.msra.mxu0 %v72
  %90 = vmatpush.msra.mxu0 %v71
  %91 = vmatpush.msra.mxu0 %v70
  %92 = vmatpush.msra.mxu0 %v69
  %93 = vmatpush.msra.mxu0 %v68
  %94 = vmatpush.msra.mxu0 %v67
  %95 = vmatpush.msra.mxu0 %v66
  %96 = vmatpush.msra.mxu0 %v65
  %97 = vmatmul.f32.gmra.mxu0 %v79
  %v98 = vpop.f32.mrf.mxu0
  %v99 = vadd.f32 %v75, %v98
  %100 = vdwg.mxu0
  %v101 = vmax.f32 %v99, 0.0
  %v102 = vld [vmem:[%s5] sm:$0xff]
  %v103 = vld [vmem:[%s5 + $0x8] sm:$0xff]
  %v104 = vld [vmem:[%s5 + $0x10] sm:$0xff]
  %v105 = vld [vmem:[%s5 + $0x18] sm:$0xff]
  %v106 = vld [vmem:[%s5 + $0x20] sm:$0xff]
  %v107 = vld [vmem:[%s5 + $0x28] sm:$0xff]
  %v108 = vld [vmem:[%s5 + $0x30] sm:$0xff]
  %v109 = vld [vmem:[%s5 + $0x38] sm:$0xff]
  %v110 = vld [vmem:[%s5 + $0x40] sm:$0xff]
  %v111 = vld [vmem:[%s5 + $0x48] sm:$0xff]
  %v112 = vld [vmem:[%s5 + $0x50] sm:$0xff]
  %v113 = vld [vmem:[%s5 + $0x58] sm:$0xff]
  %v114 = vld [vmem:[%s5 + $0x60] sm:$0xff]
  %v115 = vld [vmem:[%s5 + $0x68] sm:$0xff]
  %v116 = vld [vmem:[%s5 + $0x70] sm:$0xff]
  %v117 = vld [vmem:[%s5 + $0x78] sm:$0xff]
  %v118 = vld [vmem:[#allocation2] sm:$0x1]
  %v120 = vperm.slane %v118, 0
  %122 = vmatpush.msra.mxu0 %v117
  %123 = vmatpush.msra.mxu0 %v116
  %124 = vmatpush.msra.mxu0 %v115
  %125 = vmatpush.msra.mxu0 %v114
  %126 = vmatpush.msra.mxu0 %v113
  %127 = vmatpush.msra.mxu0 %v112
  %128 = vmatpush.msra.mxu0 %v111
  %129 = vmatpush.msra.mxu0 %v110
  %130 = vmatpush.msra.mxu0 %v109
  %131 = vmatpush.msra.mxu0 %v108
  %132 = vmatpush.msra.mxu0 %v107
  %133 = vmatpush.msra.mxu0 %v106
  %134 = vmatpush.msra.mxu0 %v105
  %135 = vmatpush.msra.mxu0 %v104
  %136 = vmatpush.msra.mxu0 %v103
  %137 = vmatpush.msra.mxu0 %v102
  %138 = vmatmul.f32.gmra.mxu0 %v101
  %v139 = vpop.f32.mrf.mxu0
  %v140 = vadd.f32 %v120, %v139
  %141 = vdwg.mxu0
  %vm142 = vcmask 7168
  %143 = vst.msk [vmem:[%s7] sm:$0xff] %vm142, %v140
  // Predicated region
  $region30: #{tpu_custom_call.1} parent=0 // pred_check
    _
  $region31: #{tpu_custom_call.1} parent=0 // pred_check_branch
    %145 = sbr.rel (0) target = $region33
  $region32: #{tpu_custom_call.1} parent=0 // pred_region
    _
  $region33: #{tpu_custom_call.1} parent=0 // pred_fallthru
    _
  // Predicated region
  $region34: #{tpu_custom_call.1} parent=0 // pred_check
    _
  $region35: #{tpu_custom_call.1} parent=0 // pred_check_branch
    %147 = sbr.rel (0) target = $region37
  $region36: #{tpu_custom_call.1} parent=0 // pred_region
    _
  $region37: #{tpu_custom_call.1} parent=0 // pred_fallthru
    _

</llo_original>
